<compile_context>
chip_gen: v7x
topology: tpu7x:2x2x1
jax: 0.10.0
libtpu: 0.0.40
codegen_flags: <defaults>
</compile_context>

<pallas_src>
import functools

import jax
import jax.numpy as jnp
from jax.experimental import pallas as pl
from jax.experimental.pallas import tpu as pltpu

N_HIDDEN = 128
N_OUT = 10


def _round_up(x: int, m: int) -> int:
    return ((x + m - 1) // m) * m


def _choose_tb(batch: int) -> int:
    """Batch tile: multiple of 8, >=2 grid steps when possible, cap 1024."""
    if batch <= 8:
        return 8
    tb = _round_up(pl.cdiv(batch, 2), 8)   # aim for >= 2 grid steps (v7x dual TC)
    return min(tb, 1024)


def _bid_mlp_kernel(x_ref, w1_ref, b1_ref, w2_ref, b2_ref, w3_ref, b3_ref,
                    o_ref):
    # x_ref: (TB, n_obs) f32; w*: bf16; b*: (1, N) f32 (broadcast over batch).
    x = x_ref[...].astype(jnp.bfloat16)
    # Layer 1: Linear(n_obs, 128) + ReLU  (bf16 MXU, f32 accumulate, f32 VPU)
    h1 = jnp.dot(x, w1_ref[...], preferred_element_type=jnp.float32)
    h1 = jnp.maximum(h1 + b1_ref[...], 0.0)
    # Layer 2: Linear(128, 128) + ReLU
    h2 = jnp.dot(h1.astype(jnp.bfloat16), w2_ref[...],
                 preferred_element_type=jnp.float32)
    h2 = jnp.maximum(h2 + b2_ref[...], 0.0)
    # Layer 3: Linear(128, 10), no activation (un-padded 10-wide output)
    out = jnp.dot(h2.astype(jnp.bfloat16), w3_ref[...],
                  preferred_element_type=jnp.float32)
    o_ref[...] = (out + b3_ref[...]).astype(o_ref.dtype)


def prepare_params(params):
    """One-time (init / weight-update time) parameter preparation.

    Casts weights to bf16 and normalizes biases to (1, N) f32 so the per-call
    forward graph contains nothing but the pallas_call.
    """
    return {
        "w1": params["w1"].astype(jnp.bfloat16),                 # (n_obs, 128)
        "w2": params["w2"].astype(jnp.bfloat16),                 # (128, 128)
        "w3": params["w3"].astype(jnp.bfloat16),                 # (128, 10)
        "b1": params["b1"].reshape(1, N_HIDDEN).astype(jnp.float32),
        "b2": params["b2"].reshape(1, N_HIDDEN).astype(jnp.float32),
        "b3": params["b3"].reshape(1, N_OUT).astype(jnp.float32),
    }


@jax.jit
def bid_network_forward(x, prepared):
    """x: (B, n_obs) float32.  prepared: output of prepare_params."""
    B, n_obs = x.shape
    tb = _choose_tb(B)
    grid = (pl.cdiv(B, tb),)

    w1, w2, w3 = prepared["w1"], prepared["w2"], prepared["w3"]
    b1, b2, b3 = prepared["b1"], prepared["b2"], prepared["b3"]

    def resident(shape):
        # Weights / biases: same block every grid step -> resident in VMEM.
        return pl.BlockSpec(shape, lambda i: (0, 0))

    in_specs = [
        pl.BlockSpec((tb, n_obs), lambda i: (i, 0)),   # x (last dim = full dim)
        resident(w1.shape), resident(b1.shape),
        resident(w2.shape), resident(b2.shape),
        resident(w3.shape), resident(b3.shape),
    ]
    # Un-padded output: block last dim equals full array dim (10) -> legal.
    out_specs = pl.BlockSpec((tb, N_OUT), lambda i: (i, 0))

    flops = 2 * B * (n_obs * N_HIDDEN + N_HIDDEN * N_HIDDEN
                     + N_HIDDEN * N_OUT)
    bytes_accessed = (x.size * 4
                      + (w1.size + w2.size + w3.size) * 2
                      + (b1.size + b2.size + b3.size) * 4
                      + B * N_OUT * 4)

    return pl.pallas_call(
        _bid_mlp_kernel,
        out_shape=jax.ShapeDtypeStruct((B, N_OUT), jnp.float32),
        grid=grid,
        in_specs=in_specs,
        out_specs=out_specs,
        compiler_params=pltpu.CompilerParams(
            dimension_semantics=("parallel",)),
        cost_estimate=pl.CostEstimate(flops=flops, transcendentals=0,
                                      bytes_accessed=bytes_accessed),
    )(x, w1, b1, w2, b2, w3, b3)


def init_params(n_obs: int, key):
    """Deterministic init mimicking nn.Linear's uniform(-1/sqrt(fan_in), +)."""
    dims = [(n_obs, N_HIDDEN), (N_HIDDEN, N_HIDDEN), (N_HIDDEN, N_OUT)]
    params = {}
    keys = jax.random.split(key, 2 * len(dims))
    for i, (fan_in, fan_out) in enumerate(dims):
        bound = 1.0 / jnp.sqrt(jnp.float32(fan_in))
        w = jax.random.uniform(keys[2 * i], (fan_in, fan_out),
                               dtype=jnp.float32, minval=-bound, maxval=bound)
        b = jax.random.uniform(keys[2 * i + 1], (1, fan_out),
                               dtype=jnp.float32, minval=-bound, maxval=bound)
        params[f"w{i + 1}"] = w
        params[f"b{i + 1}"] = b
    return params


def reference_forward(x, params):
    """Plain-JAX reference with the same bf16-operand / f32-accum quantization."""
    h = jnp.dot(x.astype(jnp.bfloat16), params["w1"].astype(jnp.bfloat16),
                preferred_element_type=jnp.float32)
    h = jnp.maximum(h + params["b1"], 0.0)
    h = jnp.dot(h.astype(jnp.bfloat16), params["w2"].astype(jnp.bfloat16),
                preferred_element_type=jnp.float32)
    h = jnp.maximum(h + params["b2"], 0.0)
    out = jnp.dot(h.astype(jnp.bfloat16), params["w3"].astype(jnp.bfloat16),
                  preferred_element_type=jnp.float32)
    return out + params["b3"]


if __name__ == "__main__":
    B, n_obs = 2, 32  # small batch, small observation vector
    key = jax.random.PRNGKey(0)
    k_x, k_p = jax.random.split(key)

    x = jax.random.normal(k_x, (B, n_obs), dtype=jnp.float32)
    params = init_params(n_obs, k_p)
    prepared = prepare_params(params)   # one-time weight prep (hoisted)

    y = bid_network_forward(x, prepared)
    y = jax.block_until_ready(y)

    y_ref = reference_forward(x, params)
    assert y.shape == (B, N_OUT)
    assert jnp.allclose(y, y_ref, atol=1e-2, rtol=1e-2), "mismatch vs reference"

    print("KERNEL_OK")
</pallas_src>

<mosaic_0001>
module attributes {stable_mosaic.version = 11 : i64} {
  func.func @_bid_mlp_kernel(%arg0: i32, %arg1: memref<8x32xf32, #tpu.memory_space<vmem>>, %arg2: memref<32x128xbf16, #tpu.memory_space<vmem>>, %arg3: memref<1x128xf32, #tpu.memory_space<vmem>>, %arg4: memref<128x128xbf16, #tpu.memory_space<vmem>>, %arg5: memref<1x128xf32, #tpu.memory_space<vmem>>, %arg6: memref<128x10xbf16, #tpu.memory_space<vmem>>, %arg7: memref<1x10xf32, #tpu.memory_space<vmem>>, %arg8: memref<8x10xf32, #tpu.memory_space<vmem>>) attributes {dimension_semantics = [#tpu.dimension_semantics<parallel>], iteration_bounds = array<i64: 1>, scalar_prefetch = 0 : i64, scratch_operands = 0 : i64, tpu.core_type = #tpu.core_type<tc>, window_params = [{transform_indices = @transform_0, window_bounds = array<i64: 8, 32>}, {pipeline_mode = #tpu.pipeline_mode<synchronous>, transform_indices = @transform_1, window_bounds = array<i64: 32, 128>}, {pipeline_mode = #tpu.pipeline_mode<synchronous>, transform_indices = @transform_2, window_bounds = array<i64: 1, 128>}, {pipeline_mode = #tpu.pipeline_mode<synchronous>, transform_indices = @transform_3, window_bounds = array<i64: 128, 128>}, {pipeline_mode = #tpu.pipeline_mode<synchronous>, transform_indices = @transform_4, window_bounds = array<i64: 1, 128>}, {pipeline_mode = #tpu.pipeline_mode<synchronous>, transform_indices = @transform_5, window_bounds = array<i64: 128, 10>}, {pipeline_mode = #tpu.pipeline_mode<synchronous>, transform_indices = @transform_6, window_bounds = array<i64: 1, 10>}, {transform_indices = @transform_7, window_bounds = array<i64: 8, 10>}]} {
    %c0 = arith.constant 0 : index
    %c0_0 = arith.constant 0 : index
    %0 = vector.load %arg1[%c0, %c0_0] : memref<8x32xf32, #tpu.memory_space<vmem>>, vector<8x32xf32>
    %1 = arith.truncf %0 : vector<8x32xf32> to vector<8x32xbf16>
    %c0_1 = arith.constant 0 : index
    %c0_2 = arith.constant 0 : index
    %2 = vector.load %arg2[%c0_1, %c0_2] : memref<32x128xbf16, #tpu.memory_space<vmem>>, vector<32x128xbf16>
    %cst = arith.constant dense<0.000000e+00> : vector<8x128xf32>
    %3 = tpu.matmul %1, %2, %cst {dimension_numbers = #tpu.dot_dimension_numbers<[1], [0], [0], [1], [0, 0, 1, 1], [], []>} : vector<8x32xbf16>, vector<32x128xbf16>, vector<8x128xf32> -> vector<8x128xf32>
    %c0_3 = arith.constant 0 : index
    %c0_4 = arith.constant 0 : index
    %4 = vector.load %arg3[%c0_3, %c0_4] : memref<1x128xf32, #tpu.memory_space<vmem>>, vector<1x128xf32>
    %5 = vector.broadcast %4 : vector<1x128xf32> to vector<8x128xf32>
    %6 = arith.addf %3, %5 : vector<8x128xf32>
    %cst_5 = arith.constant 0.000000e+00 : f32
    %7 = vector.broadcast %cst_5 : f32 to vector<8x128xf32>
    %8 = arith.maximumf %6, %7 : vector<8x128xf32>
    %9 = arith.truncf %8 : vector<8x128xf32> to vector<8x128xbf16>
    %c0_6 = arith.constant 0 : index
    %c0_7 = arith.constant 0 : index
    %10 = vector.load %arg4[%c0_6, %c0_7] : memref<128x128xbf16, #tpu.memory_space<vmem>>, vector<128x128xbf16>
    %cst_8 = arith.constant dense<0.000000e+00> : vector<8x128xf32>
    %11 = tpu.matmul %9, %10, %cst_8 {dimension_numbers = #tpu.dot_dimension_numbers<[1], [0], [0], [1], [0, 0, 1, 1], [], []>} : vector<8x128xbf16>, vector<128x128xbf16>, vector<8x128xf32> -> vector<8x128xf32>
    %c0_9 = arith.constant 0 : index
    %c0_10 = arith.constant 0 : index
    %12 = vector.load %arg5[%c0_9, %c0_10] : memref<1x128xf32, #tpu.memory_space<vmem>>, vector<1x128xf32>
    %13 = vector.broadcast %12 : vector<1x128xf32> to vector<8x128xf32>
    %14 = arith.addf %11, %13 : vector<8x128xf32>
    %cst_11 = arith.constant 0.000000e+00 : f32
    %15 = vector.broadcast %cst_11 : f32 to vector<8x128xf32>
    %16 = arith.maximumf %14, %15 : vector<8x128xf32>
    %17 = arith.truncf %16 : vector<8x128xf32> to vector<8x128xbf16>
    %c0_12 = arith.constant 0 : index
    %c0_13 = arith.constant 0 : index
    %18 = vector.load %arg6[%c0_12, %c0_13] : memref<128x10xbf16, #tpu.memory_space<vmem>>, vector<128x10xbf16>
    %cst_14 = arith.constant dense<0.000000e+00> : vector<8x10xf32>
    %19 = tpu.matmul %17, %18, %cst_14 {dimension_numbers = #tpu.dot_dimension_numbers<[1], [0], [0], [1], [0, 0, 1, 1], [], []>} : vector<8x128xbf16>, vector<128x10xbf16>, vector<8x10xf32> -> vector<8x10xf32>
    %c0_15 = arith.constant 0 : index
    %c0_16 = arith.constant 0 : index
    %20 = vector.load %arg7[%c0_15, %c0_16] : memref<1x10xf32, #tpu.memory_space<vmem>>, vector<1x10xf32>
    %21 = vector.broadcast %20 : vector<1x10xf32> to vector<8x10xf32>
    %22 = arith.addf %19, %21 : vector<8x10xf32>
    %c0_17 = arith.constant 0 : index
    %c0_18 = arith.constant 0 : index
    %23 = vector.load %arg8[%c0_17, %c0_18] : memref<8x10xf32, #tpu.memory_space<vmem>>, vector<8x10xf32>
    tpu.vector_store %arg8[%c0_17, %c0_18], %22 {strides = array<i32>} : memref<8x10xf32, #tpu.memory_space<vmem>>, vector<8x10xf32>,
    return
  }
  func.func @transform_0(%arg0: i32) -> (i32, i32) {
    %c0_i32 = arith.constant 0 : i32
    %c0_i32_0 = arith.constant 0 : i32
    return %arg0, %c0_i32 : i32, i32
  }
  func.func @transform_1(%arg0: i32) -> (i32, i32) {
    %c0_i32 = arith.constant 0 : i32
    %c0_i32_0 = arith.constant 0 : i32
    %c0_i32_1 = arith.constant 0 : i32
    return %c0_i32, %c0_i32_0 : i32, i32
  }
  func.func @transform_2(%arg0: i32) -> (i32, i32) {
    %c0_i32 = arith.constant 0 : i32
    %c0_i32_0 = arith.constant 0 : i32
    %c0_i32_1 = arith.constant 0 : i32
    return %c0_i32, %c0_i32_0 : i32, i32
  }
  func.func @transform_3(%arg0: i32) -> (i32, i32) {
    %c0_i32 = arith.constant 0 : i32
    %c0_i32_0 = arith.constant 0 : i32
    %c0_i32_1 = arith.constant 0 : i32
    return %c0_i32, %c0_i32_0 : i32, i32
  }
  func.func @transform_4(%arg0: i32) -> (i32, i32) {
    %c0_i32 = arith.constant 0 : i32
    %c0_i32_0 = arith.constant 0 : i32
    %c0_i32_1 = arith.constant 0 : i32
    return %c0_i32, %c0_i32_0 : i32, i32
  }
  func.func @transform_5(%arg0: i32) -> (i32, i32) {
    %c0_i32 = arith.constant 0 : i32
    %c0_i32_0 = arith.constant 0 : i32
    %c0_i32_1 = arith.constant 0 : i32
    return %c0_i32, %c0_i32_0 : i32, i32
  }
  func.func @transform_6(%arg0: i32) -> (i32, i32) {
    %c0_i32 = arith.constant 0 : i32
    %c0_i32_0 = arith.constant 0 : i32
    %c0_i32_1 = arith.constant 0 : i32
    return %c0_i32, %c0_i32_0 : i32, i32
  }
  func.func @transform_7(%arg0: i32) -> (i32, i32) {
    %c0_i32 = arith.constant 0 : i32
    %c0_i32_0 = arith.constant 0 : i32
    return %arg0, %c0_i32 : i32, i32
  }
}

</mosaic_0001>

<llo_original>
// kernel: bid_network_forward.1
$region0: #{bid_network_forward.1}
  #allocation0 [shape = 'u32[]', space=smem, size = 0x4, offset = 0x4, fixed_abs, tag = 'smem constant byte address 0x4 - core index']
  #allocation1 [shape = 'u32[144,128]{1,0:T(1,128)}', space=vmem, size = 0x12000, scoped, tag = 'internal scratch']
  %s0 = inlined_call_operand.vmem [shape: f32[2,32], index: 0, kind: input, shape index: {}]
  %s1 = inlined_call_operand.vmem [shape: bf16[32,128], index: 1, kind: input, shape index: {}]
  %s2 = inlined_call_operand.vmem [shape: f32[1,128], index: 2, kind: input, shape index: {}]
  %s3 = inlined_call_operand.vmem [shape: bf16[128,128], index: 3, kind: input, shape index: {}]
  %s4 = inlined_call_operand.vmem [shape: f32[1,128], index: 4, kind: input, shape index: {}]
  %s5 = inlined_call_operand.vmem [shape: bf16[128,10], index: 5, kind: input, shape index: {}]
  %s6 = inlined_call_operand.vmem [shape: f32[1,10], index: 6, kind: input, shape index: {}]
  %s7 = inlined_call_operand.hbm [shape: f32[2,10], index: 7, kind: output, shape index: {}]
  %s8 = sld [smem:[#allocation0]]
  $region38: #{bid_network_forward.1} parent=0
    _
  %s10 = ssub.s32 1, %s8
  %s11 = scalar_select 0, %s10, %s8
  $region1: #{bid_network_forward.1} parent=0
    #allocation2 [shape = 'u8[4096]{0}', space=vmem, size = 0x1000, scoped, tag = 'output window, operand 0, single buffered']
    #allocation3 [shape = 's32[1]{0}', space=sflag, size = 0x4, scoped, tag = 'scoped memory for bid_network_forward.1']
    %12 = vsyncpa [#allocation3], 0
    // Predicated region
    $region2: #{bid_network_forward.1} parent=1 // pred_check
      _
    $region3: #{bid_network_forward.1} parent=1 // pred_check_branch
      %14 = sbr.rel (0) target = $region5
    $region4: #{bid_network_forward.1} parent=1 // pred_region
      _
    $region5: #{bid_network_forward.1} parent=1 // pred_fallthru
      _
    // Predicated region
    $region6: #{bid_network_forward.1} parent=1 // pred_check
      _
    $region7: #{bid_network_forward.1} parent=1 // pred_check_branch
      %16 = sbr.rel (0) target = $region9
    $region8: #{bid_network_forward.1} parent=1 // pred_region
      _
    $region9: #{bid_network_forward.1} parent=1 // pred_fallthru
      _
    // Predicated region
    $region10: #{bid_network_forward.1} parent=1 // pred_check
      _
    $region11: #{bid_network_forward.1} parent=1 // pred_check_branch
      %18 = sbr.rel (0) target = $region13
    $region12: #{bid_network_forward.1} parent=1 // pred_region
      _
    $region13: #{bid_network_forward.1} parent=1 // pred_fallthru
      _
    // Predicated region
    $region14: #{bid_network_forward.1} parent=1 // pred_check
      _
    $region15: #{bid_network_forward.1} parent=1 // pred_check_branch
      %20 = sbr.rel (0) target = $region17
    $region16: #{bid_network_forward.1} parent=1 // pred_region
      _
    $region17: #{bid_network_forward.1} parent=1 // pred_fallthru
      _
    // Predicated region
    $region18: #{bid_network_forward.1} parent=1 // pred_check
      _
    $region19: #{bid_network_forward.1} parent=1 // pred_check_branch
      %22 = sbr.rel (0) target = $region21
    $region20: #{bid_network_forward.1} parent=1 // pred_region
      _
    $region21: #{bid_network_forward.1} parent=1 // pred_fallthru
      _
    // Predicated region
    $region22: #{bid_network_forward.1} parent=1 // pred_check
      _
    $region23: #{bid_network_forward.1} parent=1 // pred_check_branch
      %24 = sbr.rel (0) target = $region25
    $region24: #{bid_network_forward.1} parent=1 // pred_region
      _
    $region25: #{bid_network_forward.1} parent=1 // pred_fallthru
      _
    // Predicated region
    $region26: #{bid_network_forward.1} parent=1 // pred_check
      _
    $region27: #{bid_network_forward.1} parent=1 // pred_check_branch
      %26 = sbr.rel (0) target = $region29
    $region28: #{bid_network_forward.1} parent=1 // pred_region
      _
    $region29: #{bid_network_forward.1} parent=1 // pred_fallthru
      _
    %v28 = vld [vmem:[%s0] sm:$0xff]
    %v29 = vpack.c.bf16 %v28, %v28
    %v30 = vld [vmem:[%s1] sm:$0xf]
    %v31 = vld [vmem:[%s1 + $0x4] sm:$0xf]
    %v32 = vld [vmem:[%s1 + $0x8] sm:$0xf]
    %v33 = vld [vmem:[%s1 + $0xc] sm:$0xf]
    %v34 = vld [vmem:[%s2] sm:$0x1]
    %v36 = vlaneseq
    %v37 = vshrl.u32 %v36, 7
    %v38 = vsub.s32 0, %v37
    %v39 = vrot.slane %v34, %v38
    %v45 = vunpack.c.l.b16 %v30
    %v46 = vunpack.c.l.b16 %v31
    %v47 = vunpack.c.l.b16 %v32
    %v48 = vunpack.c.l.b16 %v33
    %v49 = vpack.c.b16 %v46, %v45
    %v50 = vpack.c.b16 %v48, %v47
    %vm53 = vcmask 261120
    %v55 = vsel %vm53, %v29, 0
    %57 = vmatprep.subr.bf16.mxu0 0
    %58 = vmatpush1.bf16.msra.mxu0 %v49
    %59 = vmatprep.subr.bf16.mxu0 0
    %60 = vmatpush1.bf16.msra.mxu0 %v50
    %61 = vmatprep.subr.bf16.mxu0 0
    %62 = vmatpush1.bf16.msra.mxu0 0
    %63 = vmatprep.subr.bf16.mxu0 0
    %64 = vmatpush1.bf16.msra.mxu0 0
    %65 = vmatprep.subr.bf16.mxu0 0
    %66 = vmatpush1.bf16.msra.mxu0 0
    %67 = vmatprep.subr.bf16.mxu0 0
    %68 = vmatpush1.bf16.msra.mxu0 0
    %69 = vmatprep.subr.bf16.mxu0 0
    %70 = vmatpush1.bf16.msra.mxu0 0
    %71 = vmatprep.subr.bf16.mxu0 0
    %72 = vmatpush1.bf16.msra.mxu0 0
    %73 = vmatprep.subr.bf16.mxu0 0
    %74 = vmatpush1.bf16.msra.mxu0 0
    %75 = vmatprep.subr.bf16.mxu0 0
    %76 = vmatpush1.bf16.msra.mxu0 0
    %77 = vmatprep.subr.bf16.mxu0 0
    %78 = vmatpush1.bf16.msra.mxu0 0
    %79 = vmatprep.subr.bf16.mxu0 0
    %80 = vmatpush1.bf16.msra.mxu0 0
    %81 = vmatprep.subr.bf16.mxu0 0
    %82 = vmatpush1.bf16.msra.mxu0 0
    %83 = vmatprep.subr.bf16.mxu0 0
    %84 = vmatpush1.bf16.msra.mxu0 0
    %85 = vmatprep.subr.bf16.mxu0 0
    %86 = vmatpush1.bf16.msra.mxu0 0
    %87 = vmatprep.subr.bf16.mxu0 0
    %88 = vmatpush1.bf16.msra.mxu0 0
    %89 = vmatprep.mubr.bf16.mxu0 0
    %90 = vmatmul.mubr.bf16.gmra.mrb[0].mxu0 %v55
    %v91 = vpop.f32.mrb[0].mxu0
    %v92 = vadd.f32 %v39, %v91
    %v93 = vpop.f32.mrb[0].mxu0
    %v94 = vpop.f32.mrb[0].mxu0
    %v95 = vpop.f32.mrb[0].mxu0
    %96 = vdwg.mxu0
    %v97 = vmax.f32 %v92, 0.0
    %v98 = vpack.c.bf16 %v97, %v97
    %v99 = vld [vmem:[%s3] sm:$0xf]
    %v100 = vld [vmem:[%s3 + $0x4] sm:$0xf]
    %v101 = vld [vmem:[%s3 + $0x8] sm:$0xf]
    %v102 = vld [vmem:[%s3 + $0xc] sm:$0xf]
    %v103 = vld [vmem:[%s3 + $0x10] sm:$0xf]
    %v104 = vld [vmem:[%s3 + $0x14] sm:$0xf]
    %v105 = vld [vmem:[%s3 + $0x18] sm:$0xf]
    %v106 = vld [vmem:[%s3 + $0x1c] sm:$0xf]
    %v107 = vld [vmem:[%s3 + $0x20] sm:$0xf]
    %v108 = vld [vmem:[%s3 + $0x24] sm:$0xf]
    %v109 = vld [vmem:[%s3 + $0x28] sm:$0xf]
    %v110 = vld [vmem:[%s3 + $0x2c] sm:$0xf]
    %v111 = vld [vmem:[%s3 + $0x30] sm:$0xf]
    %v112 = vld [vmem:[%s3 + $0x34] sm:$0xf]
    %v113 = vld [vmem:[%s3 + $0x38] sm:$0xf]
    %v114 = vld [vmem:[%s3 + $0x3c] sm:$0xf]
    %v115 = vld [vmem:[%s4] sm:$0x1]
    %v117 = vlaneseq
    %v118 = vshrl.u32 %v117, 7
    %v119 = vsub.s32 0, %v118
    %v120 = vrot.slane %v115, %v119
    %v138 = vunpack.c.l.b16 %v99
    %v139 = vunpack.c.l.b16 %v100
    %v140 = vunpack.c.l.b16 %v101
    %v141 = vunpack.c.l.b16 %v102
    %v142 = vunpack.c.l.b16 %v103
    %v143 = vunpack.c.l.b16 %v104
    %v144 = vunpack.c.l.b16 %v105
    %v145 = vunpack.c.l.b16 %v106
    %v146 = vunpack.c.l.b16 %v107
    %v147 = vunpack.c.l.b16 %v108
    %v148 = vunpack.c.l.b16 %v109
    %v149 = vunpack.c.l.b16 %v110
    %v150 = vunpack.c.l.b16 %v111
    %v151 = vunpack.c.l.b16 %v112
    %v152 = vunpack.c.l.b16 %v113
    %v153 = vunpack.c.l.b16 %v114
    %v154 = vpack.c.b16 %v139, %v138
    %v155 = vpack.c.b16 %v141, %v140
    %v156 = vpack.c.b16 %v143, %v142
    %v157 = vpack.c.b16 %v145, %v144
    %v158 = vpack.c.b16 %v147, %v146
    %v159 = vpack.c.b16 %v149, %v148
    %v160 = vpack.c.b16 %v151, %v150
    %v161 = vpack.c.b16 %v153, %v152
    %170 = vmatprep.subr.bf16.mxu0 0
    %171 = vmatpush1.bf16.msra.mxu0 %v154
    %172 = vmatprep.subr.bf16.mxu0 0
    %173 = vmatpush1.bf16.msra.mxu0 %v155
    %174 = vmatprep.subr.bf16.mxu0 0
    %175 = vmatpush1.bf16.msra.mxu0 %v156
    %176 = vmatprep.subr.bf16.mxu0 0
    %177 = vmatpush1.bf16.msra.mxu0 %v157
    %178 = vmatprep.subr.bf16.mxu0 0
    %179 = vmatpush1.bf16.msra.mxu0 %v158
    %180 = vmatprep.subr.bf16.mxu0 0
    %181 = vmatpush1.bf16.msra.mxu0 %v159
    %182 = vmatprep.subr.bf16.mxu0 0
    %183 = vmatpush1.bf16.msra.mxu0 %v160
    %184 = vmatprep.subr.bf16.mxu0 0
    %185 = vmatpush1.bf16.msra.mxu0 %v161
    %186 = vmatprep.subr.bf16.mxu0 0
    %187 = vmatpush1.bf16.msra.mxu0 0
    %188 = vmatprep.subr.bf16.mxu0 0
    %189 = vmatpush1.bf16.msra.mxu0 0
    %190 = vmatprep.subr.bf16.mxu0 0
    %191 = vmatpush1.bf16.msra.mxu0 0
    %192 = vmatprep.subr.bf16.mxu0 0
    %193 = vmatpush1.bf16.msra.mxu0 0
    %194 = vmatprep.subr.bf16.mxu0 0
    %195 = vmatpush1.bf16.msra.mxu0 0
    %196 = vmatprep.subr.bf16.mxu0 0
    %197 = vmatpush1.bf16.msra.mxu0 0
    %198 = vmatprep.subr.bf16.mxu0 0
    %199 = vmatpush1.bf16.msra.mxu0 0
    %200 = vmatprep.subr.bf16.mxu0 0
    %201 = vmatpush1.bf16.msra.mxu0 0
    %202 = vmatprep.mubr.bf16.mxu0 0
    %203 = vmatmul.mubr.bf16.gmra.mrb[0].mxu0 %v98
    %v204 = vpop.f32.mrb[0].mxu0
    %v205 = vadd.f32 %v120, %v204
    %v206 = vpop.f32.mrb[0].mxu0
    %v207 = vpop.f32.mrb[0].mxu0
    %v208 = vpop.f32.mrb[0].mxu0
    %209 = vdwg.mxu0
    %v210 = vmax.f32 %v205, 0.0
    %v211 = vpack.c.bf16 %v210, %v210
    %v212 = vld [vmem:[%s5] sm:$0xf]
    %v213 = vld [vmem:[%s5 + $0x4] sm:$0xf]
    %v214 = vld [vmem:[%s5 + $0x8] sm:$0xf]
    %v215 = vld [vmem:[%s5 + $0xc] sm:$0xf]
    %v216 = vld [vmem:[%s5 + $0x10] sm:$0xf]
    %v217 = vld [vmem:[%s5 + $0x14] sm:$0xf]
    %v218 = vld [vmem:[%s5 + $0x18] sm:$0xf]
    %v219 = vld [vmem:[%s5 + $0x1c] sm:$0xf]
    %v220 = vld [vmem:[%s5 + $0x20] sm:$0xf]
    %v221 = vld [vmem:[%s5 + $0x24] sm:$0xf]
    %v222 = vld [vmem:[%s5 + $0x28] sm:$0xf]
    %v223 = vld [vmem:[%s5 + $0x2c] sm:$0xf]
    %v224 = vld [vmem:[%s5 + $0x30] sm:$0xf]
    %v225 = vld [vmem:[%s5 + $0x34] sm:$0xf]
    %v226 = vld [vmem:[%s5 + $0x38] sm:$0xf]
    %v227 = vld [vmem:[%s5 + $0x3c] sm:$0xf]
    %v228 = vld [vmem:[%s6] sm:$0x1]
    %v230 = vlaneseq
    %v231 = vshrl.u32 %v230, 7
    %v232 = vsub.s32 0, %v231
    %v233 = vrot.slane %v228, %v232
    %v251 = vunpack.c.l.b16 %v212
    %v252 = vunpack.c.l.b16 %v213
    %v253 = vunpack.c.l.b16 %v214
    %v254 = vunpack.c.l.b16 %v215
    %v255 = vunpack.c.l.b16 %v216
    %v256 = vunpack.c.l.b16 %v217
    %v257 = vunpack.c.l.b16 %v218
    %v258 = vunpack.c.l.b16 %v219
    %v259 = vunpack.c.l.b16 %v220
    %v260 = vunpack.c.l.b16 %v221
    %v261 = vunpack.c.l.b16 %v222
    %v262 = vunpack.c.l.b16 %v223
    %v263 = vunpack.c.l.b16 %v224
    %v264 = vunpack.c.l.b16 %v225
    %v265 = vunpack.c.l.b16 %v226
    %v266 = vunpack.c.l.b16 %v227
    %v267 = vpack.c.b16 %v252, %v251
    %v268 = vpack.c.b16 %v254, %v253
    %v269 = vpack.c.b16 %v256, %v255
    %v270 = vpack.c.b16 %v258, %v257
    %v271 = vpack.c.b16 %v260, %v259
    %v272 = vpack.c.b16 %v262, %v261
    %v273 = vpack.c.b16 %v264, %v263
    %v274 = vpack.c.b16 %v266, %v265
    %283 = vmatprep.subr.bf16.mxu0 0
    %284 = vmatpush1.bf16.msra.mxu0 %v267
    %285 = vmatprep.subr.bf16.mxu0 0
    %286 = vmatpush1.bf16.msra.mxu0 %v268
    %287 = vmatprep.subr.bf16.mxu0 0
    %288 = vmatpush1.bf16.msra.mxu0 %v269
    %289 = vmatprep.subr.bf16.mxu0 0
    %290 = vmatpush1.bf16.msra.mxu0 %v270
    %291 = vmatprep.subr.bf16.mxu0 0
    %292 = vmatpush1.bf16.msra.mxu0 %v271
    %293 = vmatprep.subr.bf16.mxu0 0
    %294 = vmatpush1.bf16.msra.mxu0 %v272
    %295 = vmatprep.subr.bf16.mxu0 0
    %296 = vmatpush1.bf16.msra.mxu0 %v273
    %297 = vmatprep.subr.bf16.mxu0 0
    %298 = vmatpush1.bf16.msra.mxu0 %v274
    %299 = vmatprep.subr.bf16.mxu0 0
    %300 = vmatpush1.bf16.msra.mxu0 0
    %301 = vmatprep.subr.bf16.mxu0 0
    %302 = vmatpush1.bf16.msra.mxu0 0
    %303 = vmatprep.subr.bf16.mxu0 0
    %304 = vmatpush1.bf16.msra.mxu0 0
    %305 = vmatprep.subr.bf16.mxu0 0
    %306 = vmatpush1.bf16.msra.mxu0 0
    %307 = vmatprep.subr.bf16.mxu0 0
    %308 = vmatpush1.bf16.msra.mxu0 0
    %309 = vmatprep.subr.bf16.mxu0 0
    %310 = vmatpush1.bf16.msra.mxu0 0
    %311 = vmatprep.subr.bf16.mxu0 0
    %312 = vmatpush1.bf16.msra.mxu0 0
    %313 = vmatprep.subr.bf16.mxu0 0
    %314 = vmatpush1.bf16.msra.mxu0 0
    %315 = vmatprep.mubr.bf16.mxu0 0
    %316 = vmatmul.mubr.bf16.gmra.mrb[0].mxu0 %v211
    %v317 = vpop.f32.mrb[0].mxu0
    %v318 = vadd.f32 %v233, %v317
    %v319 = vpop.f32.mrb[0].mxu0
    %v320 = vpop.f32.mrb[0].mxu0
    %v321 = vpop.f32.mrb[0].mxu0
    %322 = vdwg.mxu0
    %vm323 = vcmask 80896
    %324 = vst.msk [vmem:[#allocation2] sm:$0xff] %vm323, %v318
    // Predicated region
    $region30: #{bid_network_forward.1} parent=1 // pred_check
      _
    $region31: #{bid_network_forward.1} parent=1 // pred_check_branch
      %326 = sbr.rel (0) target = $region33
    $region32: #{bid_network_forward.1} parent=1 // pred_region
      %s328 = ssub.s32 128, 32
      %329 = vsyncadd [#allocation3], %s328
      %s330 = sshll.u32 [#allocation2], 4
      %s331 = int_to_ptr.vmem [resolvable:$true] %s330
      %336 = dma.vmem_to_hbm [thread:$0]  %s331, 32, %s7, [#allocation3], 32, 32, 2
    $region33: #{bid_network_forward.1} parent=1 // pred_fallthru
      _
    // Predicated region
    $region34: #{bid_network_forward.1} parent=1 // pred_check
      _
    $region35: #{bid_network_forward.1} parent=1 // pred_check_branch
      %338 = sbr.rel (0) target = $region37
    $region36: #{bid_network_forward.1} parent=1 // pred_region
      %339 = dma.done [#allocation3], 128
    $region37: #{bid_network_forward.1} parent=1 // pred_fallthru
      _
    %340 = vsyncpa [#allocation3], 1

</llo_original>
